<compile_context>
chip_gen: v7x
topology: tpu7x:2x2x1
jax: 0.10.0
libtpu: 0.0.40
codegen_flags: <defaults>
</compile_context>

<pallas_src>
import jax
import jax.numpy as jnp
from jax.experimental import pallas as pl
from jax.experimental.pallas import tpu as pltpu

ROWS, COLS = 2, 2  # shapes fixed by SampleModel's registered buffers


def _sample_model_kernel(ab_ref, x_ref, q_ref, o_ref):
    # ab_ref: (2, N) int32 in VMEM — row 0 = a (flattened), row 1 = b (flattened).
    # x_ref, q_ref, o_ref: (1, N) int32, lane-dense.
    # Static slices -> zero-cost views; all math is VPU elementwise in one vreg row.
    a = ab_ref[0:1, :]
    b = ab_ref[1:2, :]
    o_ref[...] = a * x_ref[...] + b + q_ref[...]  # z = a*x ; y = z + b ; y = y + q


def pack_buffers(a, b):
    """Module-init-time packing of the static buffers (NOT on the hot path)."""
    return jnp.stack([a.reshape(-1), b.reshape(-1)], axis=0)  # (2, R*C) int32


def fused_forward(a, b, x, q):
    """Production fast path for tiny shapes: let XLA fuse it (zero extra launches)."""
    return a * x + b + q


def stateful_wrapper_forward(ab_packed, x, q):
    """Pallas equivalent of StatefulWrapperModule(SampleModel(), SampleModel.forward).

    ab_packed: (2, R*C) int32 produced once by `pack_buffers`.
    x, q:      (R, C) int32 runtime inputs.
    """
    r, c = x.shape
    n = r * c

    # Lane-dense presentation; (R,C)->(1,N) is a metadata reshape.
    x2 = x.reshape(1, n)
    q2 = q.reshape(1, n)

    cost = pl.CostEstimate(
        flops=3 * n,                   # mul + add + add per element
        transcendentals=0,
        bytes_accessed=5 * n * 4,      # ab (2N) + x (N) + q (N) + out (N), int32
    )

    out_flat = pl.pallas_call(
        _sample_model_kernel,
        out_shape=jax.ShapeDtypeStruct((1, n), jnp.int32),
        in_specs=[
            pl.BlockSpec(memory_space=pltpu.VMEM),  # ab_packed, full array, no grid
            pl.BlockSpec(memory_space=pltpu.VMEM),  # x
            pl.BlockSpec(memory_space=pltpu.VMEM),  # q
        ],
        out_specs=pl.BlockSpec(memory_space=pltpu.VMEM),
        cost_estimate=cost,
    )(ab_packed, x2, q2)

    return out_flat.reshape(r, c)


if __name__ == "__main__":
    # Buffers initialized deterministically exactly as in SampleModel.__init__.
    a = 3 * jnp.ones((ROWS, COLS), dtype=jnp.int32)
    b = 2 * jnp.ones((ROWS, COLS), dtype=jnp.int32)
    # One-time (module-init) packing of the static buffers — off the hot path.
    ab_packed = jax.block_until_ready(pack_buffers(a, b))

    # Example inputs (int32, matching the bundled_program test inputs).
    key = jax.random.PRNGKey(0)
    kx, kq = jax.random.split(key)
    x = jax.random.randint(kx, (ROWS, COLS), minval=0, maxval=10, dtype=jnp.int32)
    q = jax.random.randint(kq, (ROWS, COLS), minval=0, maxval=10, dtype=jnp.int32)

    out = stateful_wrapper_forward(ab_packed, x, q)
    jax.block_until_ready(out)

    # Reference check (pure JAX) of the wrapped forward semantics.
    ref = a * x + b + q
    assert out.dtype == jnp.int32 and out.shape == (ROWS, COLS)
    assert bool(jnp.all(out == ref))

    print("KERNEL_OK")
</pallas_src>

<mosaic_0001>
module attributes {stable_mosaic.version = 11 : i64} {
  func.func @_sample_model_kernel(%arg0: memref<2x4xi32, #tpu.memory_space<vmem>>, %arg1: memref<1x4xi32, #tpu.memory_space<vmem>>, %arg2: memref<1x4xi32, #tpu.memory_space<vmem>>, %arg3: memref<1x4xi32, #tpu.memory_space<vmem>>) attributes {dimension_semantics = [], scalar_prefetch = 0 : i64, scratch_operands = 0 : i64, tpu.core_type = #tpu.core_type<tc>} {
    %c0 = arith.constant 0 : index
    %c0_0 = arith.constant 0 : index
    %0 = vector.load %arg0[%c0, %c0_0] : memref<2x4xi32, #tpu.memory_space<vmem>>, vector<1x4xi32>
    %c1 = arith.constant 1 : index
    %c0_1 = arith.constant 0 : index
    %1 = vector.load %arg0[%c1, %c0_1] : memref<2x4xi32, #tpu.memory_space<vmem>>, vector<1x4xi32>
    %c0_2 = arith.constant 0 : index
    %c0_3 = arith.constant 0 : index
    %2 = vector.load %arg1[%c0_2, %c0_3] : memref<1x4xi32, #tpu.memory_space<vmem>>, vector<1x4xi32>
    %3 = arith.muli %0, %2 : vector<1x4xi32>
    %4 = arith.addi %3, %1 : vector<1x4xi32>
    %c0_4 = arith.constant 0 : index
    %c0_5 = arith.constant 0 : index
    %5 = vector.load %arg2[%c0_4, %c0_5] : memref<1x4xi32, #tpu.memory_space<vmem>>, vector<1x4xi32>
    %6 = arith.addi %4, %5 : vector<1x4xi32>
    %c0_6 = arith.constant 0 : index
    %c0_7 = arith.constant 0 : index
    %7 = vector.load %arg3[%c0_6, %c0_7] : memref<1x4xi32, #tpu.memory_space<vmem>>, vector<1x4xi32>
    tpu.vector_store %arg3[%c0_6, %c0_7], %6 {strides = array<i32>} : memref<1x4xi32, #tpu.memory_space<vmem>>, vector<1x4xi32>,
    return
  }
}

</mosaic_0001>

<llo_original>
// kernel: tpu_custom_call.1
$region0: #{tpu_custom_call.1}
  #allocation0 [shape = 'u32[]', space=smem, size = 0x4, offset = 0x4, fixed_abs, tag = 'smem constant byte address 0x4 - core index']
  #allocation1 [shape = 'u32[144,128]{1,0:T(1,128)}', space=vmem, size = 0x12000, scoped, tag = 'internal scratch']
  %s0 = inlined_call_operand.hbm [shape: s32[2,4], index: 0, kind: input, shape index: {}]
  %s1 = inlined_call_operand.vmem [shape: s32[1,4], index: 1, kind: input, shape index: {}]
  %s2 = inlined_call_operand.vmem [shape: s32[1,4], index: 2, kind: input, shape index: {}]
  %s3 = inlined_call_operand.hbm [shape: s32[1,4], index: 3, kind: output, shape index: {}]
  %s4 = sld [smem:[#allocation0]]
  $region26: #{tpu_custom_call.1} parent=0
    _
  %s6 = ssub.s32 1, %s4
  %s7 = scalar_select 0, %s6, %s4
  $region1: #{tpu_custom_call.1} parent=0
    #allocation2 [shape = 'u8[1024]{0}', space=vmem, size = 0x400, scoped, tag = 'input window, operand 0, single buffered']
    #allocation3 [shape = 's32[1]{0}', space=sflag, size = 0x4, scoped, tag = 'scoped memory for tpu_custom_call.1']
    #allocation4 [shape = 's32[1]{0}', space=sflag, size = 0x4, scoped, tag = 'scoped memory for tpu_custom_call.1']
    #allocation5 [shape = 'u8[512]{0}', space=vmem, size = 0x400, scoped, tag = 'output window, operand 0, single buffered']
    %8 = vsyncpa [#allocation3], 0
    %9 = vsyncpa [#allocation4], 0
    // Predicated region
    $region2: #{tpu_custom_call.1} parent=1 // pred_check
      _
    $region3: #{tpu_custom_call.1} parent=1 // pred_check_branch
      %11 = sbr.rel (0) target = $region5
    $region4: #{tpu_custom_call.1} parent=1 // pred_region
      %s13 = ssub.s32 32, 32
      %14 = vsyncadd [#allocation3], %s13
      %s16 = sshll.u32 [#allocation2], 4
      %s17 = int_to_ptr.vmem [resolvable:$true] %s16
      %19 = dma.hbm_to_vmem [thread:$0]  %s0, 32, %s17, [#allocation3]
    $region5: #{tpu_custom_call.1} parent=1 // pred_fallthru
      _
    // Predicated region
    $region6: #{tpu_custom_call.1} parent=1 // pred_check
      _
    $region7: #{tpu_custom_call.1} parent=1 // pred_check_branch
      %21 = sbr.rel (0) target = $region9
    $region8: #{tpu_custom_call.1} parent=1 // pred_region
      _
    $region9: #{tpu_custom_call.1} parent=1 // pred_fallthru
      _
    // Predicated region
    $region10: #{tpu_custom_call.1} parent=1 // pred_check
      _
    $region11: #{tpu_custom_call.1} parent=1 // pred_check_branch
      %23 = sbr.rel (0) target = $region13
    $region12: #{tpu_custom_call.1} parent=1 // pred_region
      _
    $region13: #{tpu_custom_call.1} parent=1 // pred_fallthru
      _
    // Predicated region
    $region14: #{tpu_custom_call.1} parent=1 // pred_check
      _
    $region15: #{tpu_custom_call.1} parent=1 // pred_check_branch
      %25 = sbr.rel (0) target = $region17
    $region16: #{tpu_custom_call.1} parent=1 // pred_region
      %26 = dma.done [#allocation3], 32
    $region17: #{tpu_custom_call.1} parent=1 // pred_fallthru
      _
    %v27 = vld [vmem:[#allocation2] sm:$0x1]
    %v28 = vld [vmem:[#allocation2 + $0x1] sm:$0x1]
    %v29 = vld [vmem:[%s1] sm:$0x1]
    %v30 = vmul.u32 %v27, %v29
    %v31 = vadd.s32 %v30, %v28
    %v32 = vld [vmem:[%s2] sm:$0x1]
    %v33 = vadd.s32 %v31, %v32
    %vm34 = vcmask 24576
    %35 = vst.msk [vmem:[#allocation5] sm:$0x1] %vm34, %v33
    // Predicated region
    $region18: #{tpu_custom_call.1} parent=1 // pred_check
      _
    $region19: #{tpu_custom_call.1} parent=1 // pred_check_branch
      %37 = sbr.rel (0) target = $region21
    $region20: #{tpu_custom_call.1} parent=1 // pred_region
      %s39 = ssub.s32 16, 16
      %40 = vsyncadd [#allocation4], %s39
      %s42 = sshll.u32 [#allocation5], 4
      %s43 = int_to_ptr.vmem [resolvable:$true] %s42
      %45 = dma.vmem_to_hbm [thread:$0]  %s43, 16, %s3, [#allocation4]
    $region21: #{tpu_custom_call.1} parent=1 // pred_fallthru
      _
    // Predicated region
    $region22: #{tpu_custom_call.1} parent=1 // pred_check
      _
    $region23: #{tpu_custom_call.1} parent=1 // pred_check_branch
      %47 = sbr.rel (0) target = $region25
    $region24: #{tpu_custom_call.1} parent=1 // pred_region
      %48 = dma.done [#allocation4], 16
    $region25: #{tpu_custom_call.1} parent=1 // pred_fallthru
      _
    %49 = vsyncpa [#allocation3], 1
    %50 = vsyncpa [#allocation4], 1

</llo_original>
